<compile_context>
chip_gen: v6e
topology: v6e:2x2x1
jax: 0.10.0
libtpu: 0.0.40
codegen_flags: <defaults>
</compile_context>

<pallas_src>
import functools

import numpy as np
import jax
import jax.numpy as jnp
from jax.experimental import pallas as pl
from jax.experimental.pallas import tpu as pltpu

LRELU_SLOPE = 0.01
BN_EPS = 1e-5
LANE = 128
ROW_ALIGN = 256          # MXU M/N face on v6e/v7x
NEG_INF = -1e30


def _lrelu(x):
    # leaky_relu with slope in (0, 1): max(x, slope * x)
    return jnp.maximum(x, LRELU_SLOPE * x)


def _round_up(n, m):
    return ((n + m - 1) // m) * m


def _attn_tiles(hw):
    """Padded row count + (q-tile, kv-tile).  Tiles are always >=256 rows and
    multiples of 256 so bf16 sublane packing / MXU faces are never violated."""
    hwp = _round_up(max(hw, 1), ROW_ALIGN)
    tq = min(1024, hwp)
    while hwp % tq:
        tq -= ROW_ALIGN
    tk = min(512, tq)
    while tq % tk:
        tk -= ROW_ALIGN
    return hwp, tq, tk


def _row_tile(hwp, cap):
    """Largest multiple of 256 that divides hwp and is <= cap."""
    t = min(cap, hwp)
    t -= t % ROW_ALIGN
    while hwp % t:
        t -= ROW_ALIGN
    return t


def _vmem_limit_bytes():
    """Generation-aware scoped-VMEM budget (~78% of physical VMEM)."""
    cap = None
    try:
        cap = getattr(pltpu.get_tpu_info(), "vmem_capacity_bytes", None)
    except Exception:
        cap = None
    if not cap:
        return 64 << 20        # conservative fallback, valid on every generation
    return int(cap * 0.78)


def _buffered_spec(shape, index_map, nbuf):
    """BlockSpec with N-deep pipelining when the API supports it."""
    try:
        if hasattr(pl, "Buffered"):
            return pl.BlockSpec(shape, index_map, pipeline_mode=pl.Buffered(nbuf))
    except Exception:
        pass
    return pl.BlockSpec(shape, index_map)


# ----------------------------------------------------------------------------
# Kernel 1: shared key/query projection (+ folded BN + lrelu) and value conv.
# ----------------------------------------------------------------------------
def _proj_kernel(x_ref, wk_ref, kb_ref, wv_ref, vb_ref, qk_ref, v_ref):
    x = x_ref[0]                                                   # (TP, Cp) bf16
    q = jnp.dot(x, wk_ref[...], preferred_element_type=jnp.float32) + kb_ref[...]
    qk_ref[0] = _lrelu(q).astype(qk_ref.dtype)                     # (TP, Ckp) bf16
    v = jnp.dot(x, wv_ref[...], preferred_element_type=jnp.float32) + vb_ref[...]
    v_ref[0] = v.astype(v_ref.dtype)                               # (TP, Cvp) bf16


# ----------------------------------------------------------------------------
# Kernel 2a: K/V-resident flash attention + fused W conv.
# grid = (batch, q_tile); whole per-batch K/V blocks live in VMEM and the kv
# loop runs in-kernel, so K/V are fetched from HBM exactly once per batch.
# ----------------------------------------------------------------------------
def _flash_resident_kernel(hw, hwp, tk, q_ref, k_ref, v_ref, ww_ref, wb_ref,
                           o_ref, m_sc, l_sc, acc_sc):
    m_sc[...] = jnp.full(m_sc.shape, NEG_INF, m_sc.dtype)
    l_sc[...] = jnp.zeros_like(l_sc)
    acc_sc[...] = jnp.zeros_like(acc_sc)

    q = q_ref[0]                                                   # (TQ, Ckp) bf16

    @pl.loop(0, hwp // tk)
    def _(i):
        off = pl.multiple_of(i * tk, tk)
        k = k_ref[0, pl.ds(off, tk), :]                            # (TK, Ckp) bf16
        v = v_ref[0, pl.ds(off, tk), :]                            # (TK, Cvp) bf16
        # Contract the shared channel axis (no materialized transpose).
        # The softmax scale is already folded into q and k.
        s = jax.lax.dot_general(q, k, (((1,), (1,)), ((), ())),
                                preferred_element_type=jnp.float32)  # (TQ, TK)
        if hwp != hw:   # padded KV rows must never contribute to the softmax
            col = jax.lax.broadcasted_iota(jnp.int32, s.shape, 1) + off
            s = jnp.where(col < hw, s, NEG_INF)

        m_prev = m_sc[...]
        m_new = jnp.maximum(m_prev, jnp.max(s, axis=-1, keepdims=True))
        alpha = jnp.exp(m_prev - m_new)
        p = jnp.exp(s - m_new)
        l_sc[...] = alpha * l_sc[...] + jnp.sum(p, axis=-1, keepdims=True)
        acc_sc[...] = alpha * acc_sc[...] + jnp.dot(
            p.astype(v.dtype), v, preferred_element_type=jnp.float32)
        m_sc[...] = m_new

    # approx reciprocal goes to the EUP (free slot); error far below the bf16
    # operand noise already present.
    ctx = acc_sc[...] * pl.reciprocal(l_sc[...], approx=True)      # (TQ, Cvp) f32
    out = jnp.dot(ctx.astype(ww_ref.dtype), ww_ref[...],
                  preferred_element_type=jnp.float32) + wb_ref[...]
    o_ref[0] = out.astype(o_ref.dtype)


# ----------------------------------------------------------------------------
# Kernel 2b: streaming flash attention (online softmax) + fused W conv.
# grid = (batch, q_tile, kv_tile); kv innermost ("arbitrary"), rest parallel.
# ----------------------------------------------------------------------------
def _flash_stream_kernel(hw, hwp, tk, q_ref, k_ref, v_ref, ww_ref, wb_ref,
                         o_ref, m_sc, l_sc, acc_sc):
    ki = pl.program_id(2)

    @pl.when(ki == 0)
    def _():
        m_sc[...] = jnp.full(m_sc.shape, NEG_INF, m_sc.dtype)
        l_sc[...] = jnp.zeros_like(l_sc)
        acc_sc[...] = jnp.zeros_like(acc_sc)

    q = q_ref[0]                                                   # (TQ, Ckp) bf16
    k = k_ref[0]                                                   # (TK, Ckp) bf16
    s = jax.lax.dot_general(q, k, (((1,), (1,)), ((), ())),
                            preferred_element_type=jnp.float32)    # (TQ, TK) f32
    if hwp != hw:
        col = jax.lax.broadcasted_iota(jnp.int32, s.shape, 1) + ki * tk
        s = jnp.where(col < hw, s, NEG_INF)

    m_prev = m_sc[...]
    m_new = jnp.maximum(m_prev, jnp.max(s, axis=-1, keepdims=True))
    alpha = jnp.exp(m_prev - m_new)
    p = jnp.exp(s - m_new)
    l_sc[...] = alpha * l_sc[...] + jnp.sum(p, axis=-1, keepdims=True)
    acc_sc[...] = alpha * acc_sc[...] + jnp.dot(
        p.astype(v_ref.dtype), v_ref[0], preferred_element_type=jnp.float32)
    m_sc[...] = m_new

    @pl.when(ki == pl.num_programs(2) - 1)
    def _():
        ctx = acc_sc[...] * pl.reciprocal(l_sc[...], approx=True)  # (TQ, Cvp) f32
        out = jnp.dot(ctx.astype(ww_ref.dtype), ww_ref[...],
                      preferred_element_type=jnp.float32) + wb_ref[...]
        o_ref[0] = out.astype(o_ref.dtype)


# ----------------------------------------------------------------------------
# Wrapper
# ----------------------------------------------------------------------------
def pyramid_self_attention_forward(x_nchw, rp):
    N, C, H, W = x_nchw.shape
    HW = H * W
    Ck = rp['key_w'].shape[1]
    Cv = rp['val_w'].shape[1]
    Cout = rp['W_w'].shape[1]

    Cp, Ckp, Cvp, Coutp = (_round_up(c, LANE) for c in (C, Ck, Cv, Cout))
    HWp, TQ, TK = _attn_tiles(HW)
    TP = _row_tile(HWp, 1024)          # projection is HBM-streaming bound
    nTq, nTk, nTp = HWp // TQ, HWp // TK, HWp // TP

    vmem_limit = _vmem_limit_bytes()

    # Fold eval-mode BN + half the softmax scale into the shared key/query conv.
    gamma, beta, mean, var = rp['key_bn']
    bn_s = gamma * jax.lax.rsqrt(var + BN_EPS)
    half_scale = Ck ** -0.25
    wk = rp['key_w'] * (bn_s * half_scale)[None, :]
    kb = ((rp['key_b'] - mean) * bn_s + beta) * half_scale

    def pad_w(w, rows, cols):
        return jnp.pad(w, ((0, rows - w.shape[0]),
                           (0, cols - w.shape[1]))).astype(jnp.bfloat16)

    def pad_b(b, cols):
        return jnp.pad(b, (0, cols - b.shape[0]))[None, :].astype(jnp.float32)

    wk_p, kb_p = pad_w(wk, Cp, Ckp), pad_b(kb, Ckp)
    wv_p, vb_p = pad_w(rp['val_w'], Cp, Cvp), pad_b(rp['val_b'], Cvp)
    ww_p, wb_p = pad_w(rp['W_w'], Cvp, Coutp), pad_b(rp['W_b'], Coutp)

    # channels-last, bf16 before the transpose (halves the relayout traffic),
    # rows padded to HWp and channels to Cp (padded x rows/cols are zero).
    x = jnp.transpose(x_nchw.astype(jnp.bfloat16), (0, 2, 3, 1)).reshape(N, HW, C)
    x = jnp.pad(x, ((0, 0), (0, HWp - HW), (0, Cp - C)))

    # Grid-invariant weights/biases live whole in VMEM (single copy).
    vmem_full = pl.BlockSpec(memory_space=pltpu.MemorySpace.VMEM)

    # ----------------------------- projection kernel -------------------------
    qk, v = pl.pallas_call(
        _proj_kernel,
        out_shape=(jax.ShapeDtypeStruct((N, HWp, Ckp), jnp.bfloat16),
                   jax.ShapeDtypeStruct((N, HWp, Cvp), jnp.bfloat16)),
        grid_spec=pltpu.PrefetchScalarGridSpec(
            num_scalar_prefetch=0,
            grid=(N, nTp),
            in_specs=[pl.BlockSpec((1, TP, Cp), lambda b, r: (b, r, 0)),
                      vmem_full, vmem_full, vmem_full, vmem_full],
            out_specs=(pl.BlockSpec((1, TP, Ckp), lambda b, r: (b, r, 0)),
                       pl.BlockSpec((1, TP, Cvp), lambda b, r: (b, r, 0)))),
        compiler_params=pltpu.CompilerParams(
            dimension_semantics=("parallel", "parallel"),
            vmem_limit_bytes=vmem_limit),
    )(x, wk_p, kb_p, wv_p, vb_p)

    # ---------------------- flash attention + W kernel -----------------------
    scratch = [pltpu.VMEM((TQ, 1), jnp.float32),      # running max
               pltpu.VMEM((TQ, 1), jnp.float32),      # running sum
               pltpu.VMEM((TQ, Cvp), jnp.float32)]    # running context acc

    # Per-step VMEM footprint of the K/V-resident variant (double-buffered
    # q/out + per-batch K/V blocks + weights + scratch).
    resident_bytes = (2 * TQ * Ckp * 2 + 2 * HWp * (Ckp + Cvp) * 2
                      + 2 * TQ * Coutp * 2 + Cvp * Coutp * 2 + Coutp * 4
                      + 2 * TQ * 4 + TQ * Cvp * 4)
    use_resident = resident_bytes + (4 << 20) <= vmem_limit

    if use_resident:
        out_p = pl.pallas_call(
            functools.partial(_flash_resident_kernel, HW, HWp, TK),
            out_shape=jax.ShapeDtypeStruct((N, HWp, Coutp), jnp.bfloat16),
            grid_spec=pltpu.PrefetchScalarGridSpec(
                num_scalar_prefetch=0,
                grid=(N, nTq),
                in_specs=[pl.BlockSpec((1, TQ, Ckp), lambda b, qi: (b, qi, 0)),
                          # K/V block index is independent of qi -> fetched
                          # from HBM only when the batch index changes.
                          pl.BlockSpec((1, HWp, Ckp), lambda b, qi: (b, 0, 0)),
                          pl.BlockSpec((1, HWp, Cvp), lambda b, qi: (b, 0, 0)),
                          vmem_full, vmem_full],
                out_specs=pl.BlockSpec((1, TQ, Coutp), lambda b, qi: (b, qi, 0)),
                scratch_shapes=scratch),
            compiler_params=pltpu.CompilerParams(
                dimension_semantics=("parallel", "parallel"),
                vmem_limit_bytes=vmem_limit),
        )(qk, qk, v, ww_p, wb_p)
    else:
        out_p = pl.pallas_call(
            functools.partial(_flash_stream_kernel, HW, HWp, TK),
            out_shape=jax.ShapeDtypeStruct((N, HWp, Coutp), jnp.bfloat16),
            grid_spec=pltpu.PrefetchScalarGridSpec(
                num_scalar_prefetch=0,
                grid=(N, nTq, nTk),
                in_specs=[pl.BlockSpec((1, TQ, Ckp), lambda b, qi, ki: (b, qi, 0)),
                          _buffered_spec((1, TK, Ckp),
                                         lambda b, qi, ki: (b, ki, 0), 3),
                          _buffered_spec((1, TK, Cvp),
                                         lambda b, qi, ki: (b, ki, 0), 3),
                          vmem_full, vmem_full],
                out_specs=pl.BlockSpec((1, TQ, Coutp),
                                       lambda b, qi, ki: (b, qi, 0)),
                scratch_shapes=scratch),
            compiler_params=pltpu.CompilerParams(
                dimension_semantics=("parallel", "parallel", "arbitrary"),
                vmem_limit_bytes=vmem_limit),
        )(qk, qk, v, ww_p, wb_p)

    # slice/reshape/transpose in bf16, cast to f32 at the very end.
    out = out_p[:, :HW, :Cout].reshape(N, H, W, Cout).transpose(0, 3, 1, 2)
    return out.astype(jnp.float32)


# ----------------------------------------------------------------------------
# Deterministic parameter construction + pure-JAX (f32) reference
# ----------------------------------------------------------------------------
def init_params(key, C, Ck, Cv, Cout):
    ks = jax.random.split(key, 7)

    def w(k, shape, scale=0.1):
        return scale * jax.random.normal(k, shape, jnp.float32)

    k1, k2, k3, k4 = jax.random.split(ks[2], 4)
    bn = (1.0 + 0.1 * jax.random.normal(k1, (Ck,), jnp.float32),
          0.1 * jax.random.normal(k2, (Ck,), jnp.float32),
          0.1 * jax.random.normal(k3, (Ck,), jnp.float32),
          jnp.abs(jax.random.normal(k4, (Ck,), jnp.float32)) + 0.5)
    return {
        'key_w': w(ks[0], (C, Ck)), 'key_b': w(ks[1], (Ck,)), 'key_bn': bn,
        'val_w': w(ks[3], (C, Cv)), 'val_b': w(ks[4], (Cv,)),
        # NOTE: the PyTorch module zero-inits W (output would be trivially 0);
        # nonzero values are used so the attention path is actually verified.
        'W_w': w(ks[5], (Cv, Cout)), 'W_b': w(ks[6], (Cout,)),
    }


def reference_forward(x_nchw, rp):
    N, C, H, W = x_nchw.shape
    Ck = rp['key_w'].shape[1]
    x = jnp.transpose(x_nchw, (0, 2, 3, 1)).reshape(N, H * W, C)
    gamma, beta, mean, var = rp['key_bn']
    qk = x @ rp['key_w'] + rp['key_b']
    qk = (qk - mean) * jax.lax.rsqrt(var + BN_EPS) * gamma + beta
    qk = jnp.where(qk >= 0, qk, LRELU_SLOPE * qk)
    v = x @ rp['val_w'] + rp['val_b']
    sim = jnp.einsum('bqc,bkc->bqk', qk, qk) * (Ck ** -0.5)
    p = jax.nn.softmax(sim, axis=-1)
    ctx = jnp.einsum('bqk,bkc->bqc', p, v)
    out = ctx @ rp['W_w'] + rp['W_b']
    return out.reshape(N, H, W, -1).transpose(0, 3, 1, 2)


if __name__ == "__main__":
    key = jax.random.PRNGKey(0)

    # (N, C, H, W): the second case has H*W=240 (not a multiple of 256) so the
    # row-padding + KV masking path is exercised as well.
    configs = [(2, 8, 16, 16), (1, 8, 12, 20)]
    for N, C, H, W in configs:
        kx, kp, key = jax.random.split(key, 3)
        # in_channels=8, key_channels=in//2, value_channels=in, out_channels=in
        Ck, Cv, Cout = C // 2, C, C

        feats = jax.random.normal(kx, (N, C, H, W), jnp.float32)
        rp = init_params(kp, C, Ck, Cv, Cout)

        out = pyramid_self_attention_forward(feats, rp)
        out = jax.block_until_ready(out)

        ref = reference_forward(feats, rp)
        assert out.shape == (N, Cout, H, W), out.shape
        # bf16 MXU operands / bf16 output (f32 accumulation) -> relaxed
        # tolerance vs the f32 reference.
        np.testing.assert_allclose(np.asarray(out), np.asarray(ref),
                                   rtol=2e-2, atol=2e-2)
    print("KERNEL_OK")
</pallas_src>

<mosaic_0001>
module attributes {stable_mosaic.version = 11 : i64} {
  func.func @_proj_kernel(%arg0: i32, %arg1: i32, %arg2: memref<1x256x128xbf16, #tpu.memory_space<vmem>>, %arg3: memref<128x128xbf16, #tpu.memory_space<vmem>>, %arg4: memref<1x128xf32, #tpu.memory_space<vmem>>, %arg5: memref<128x128xbf16, #tpu.memory_space<vmem>>, %arg6: memref<1x128xf32, #tpu.memory_space<vmem>>, %arg7: memref<1x256x128xbf16, #tpu.memory_space<vmem>>, %arg8: memref<1x256x128xbf16, #tpu.memory_space<vmem>>) attributes {dimension_semantics = [#tpu.dimension_semantics<parallel>, #tpu.dimension_semantics<parallel>], iteration_bounds = array<i64: 2, 1>, scalar_prefetch = 0 : i64, scratch_operands = 0 : i64, tpu.core_type = #tpu.core_type<tc>, window_params = [{transform_indices = @transform_0, window_bounds = array<i64: 1, 256, 128>}, {pipeline_mode = #tpu.pipeline_mode<synchronous>, transform_indices = @transform_1, window_bounds = array<i64: 128, 128>}, {pipeline_mode = #tpu.pipeline_mode<synchronous>, transform_indices = @transform_2, window_bounds = array<i64: 1, 128>}, {pipeline_mode = #tpu.pipeline_mode<synchronous>, transform_indices = @transform_3, window_bounds = array<i64: 128, 128>}, {pipeline_mode = #tpu.pipeline_mode<synchronous>, transform_indices = @transform_4, window_bounds = array<i64: 1, 128>}, {transform_indices = @transform_5, window_bounds = array<i64: 1, 256, 128>}, {transform_indices = @transform_6, window_bounds = array<i64: 1, 256, 128>}]} {
    %c0 = arith.constant 0 : index
    %c0_0 = arith.constant 0 : index
    %c0_1 = arith.constant 0 : index
    %0 = vector.load %arg2[%c0, %c0_0, %c0_1] : memref<1x256x128xbf16, #tpu.memory_space<vmem>>, vector<1x256x128xbf16>
    %1 = vector.shape_cast %0 : vector<1x256x128xbf16> to vector<256x128xbf16>
    %c0_2 = arith.constant 0 : index
    %c0_3 = arith.constant 0 : index
    %2 = vector.load %arg3[%c0_2, %c0_3] : memref<128x128xbf16, #tpu.memory_space<vmem>>, vector<128x128xbf16>
    %cst = arith.constant dense<0.000000e+00> : vector<256x128xf32>
    %3 = tpu.matmul %1, %2, %cst {dimension_numbers = #tpu.dot_dimension_numbers<[1], [0], [0], [1], [0, 0, 1, 1], [], []>} : vector<256x128xbf16>, vector<128x128xbf16>, vector<256x128xf32> -> vector<256x128xf32>
    %c0_4 = arith.constant 0 : index
    %c0_5 = arith.constant 0 : index
    %4 = vector.load %arg4[%c0_4, %c0_5] : memref<1x128xf32, #tpu.memory_space<vmem>>, vector<1x128xf32>
    %5 = vector.broadcast %4 : vector<1x128xf32> to vector<256x128xf32>
    %6 = arith.addf %3, %5 : vector<256x128xf32>
    %cst_6 = arith.constant 0.00999999977 : f32
    %7 = vector.broadcast %cst_6 : f32 to vector<256x128xf32>
    %8 = arith.mulf %7, %6 : vector<256x128xf32>
    %9 = arith.maximumf %6, %8 : vector<256x128xf32>
    %10 = arith.truncf %9 : vector<256x128xf32> to vector<256x128xbf16>
    %c0_7 = arith.constant 0 : index
    %c0_8 = arith.constant 0 : index
    %c0_9 = arith.constant 0 : index
    %11 = vector.load %arg7[%c0_7, %c0_8, %c0_9] : memref<1x256x128xbf16, #tpu.memory_space<vmem>>, vector<1x256x128xbf16>
    %12 = vector.shape_cast %11 : vector<1x256x128xbf16> to vector<256x128xbf16>
    %13 = vector.shape_cast %10 : vector<256x128xbf16> to vector<1x256x128xbf16>
    tpu.vector_store %arg7[%c0_7, %c0_8, %c0_9], %13 {strides = array<i32>} : memref<1x256x128xbf16, #tpu.memory_space<vmem>>, vector<1x256x128xbf16>,
    %c0_10 = arith.constant 0 : index
    %c0_11 = arith.constant 0 : index
    %14 = vector.load %arg5[%c0_10, %c0_11] : memref<128x128xbf16, #tpu.memory_space<vmem>>, vector<128x128xbf16>
    %cst_12 = arith.constant dense<0.000000e+00> : vector<256x128xf32>
    %15 = tpu.matmul %1, %14, %cst_12 {dimension_numbers = #tpu.dot_dimension_numbers<[1], [0], [0], [1], [0, 0, 1, 1], [], []>} : vector<256x128xbf16>, vector<128x128xbf16>, vector<256x128xf32> -> vector<256x128xf32>
    %c0_13 = arith.constant 0 : index
    %c0_14 = arith.constant 0 : index
    %16 = vector.load %arg6[%c0_13, %c0_14] : memref<1x128xf32, #tpu.memory_space<vmem>>, vector<1x128xf32>
    %17 = vector.broadcast %16 : vector<1x128xf32> to vector<256x128xf32>
    %18 = arith.addf %15, %17 : vector<256x128xf32>
    %19 = arith.truncf %18 : vector<256x128xf32> to vector<256x128xbf16>
    %c0_15 = arith.constant 0 : index
    %c0_16 = arith.constant 0 : index
    %c0_17 = arith.constant 0 : index
    %20 = vector.load %arg8[%c0_15, %c0_16, %c0_17] : memref<1x256x128xbf16, #tpu.memory_space<vmem>>, vector<1x256x128xbf16>
    %21 = vector.shape_cast %20 : vector<1x256x128xbf16> to vector<256x128xbf16>
    %22 = vector.shape_cast %19 : vector<256x128xbf16> to vector<1x256x128xbf16>
    tpu.vector_store %arg8[%c0_15, %c0_16, %c0_17], %22 {strides = array<i32>} : memref<1x256x128xbf16, #tpu.memory_space<vmem>>, vector<1x256x128xbf16>,
    return
  }
  func.func @transform_0(%arg0: i32, %arg1: i32) -> (i32, i32, i32) {
    %c0_i32 = arith.constant 0 : i32
    %c0_i32_0 = arith.constant 0 : i32
    return %arg0, %arg1, %c0_i32 : i32, i32, i32
  }
  func.func @transform_1(%arg0: i32, %arg1: i32) -> (i32, i32) {
    %c0_i32 = arith.constant 0 : i32
    %c0_i32_0 = arith.constant 0 : i32
    %c0_i32_1 = arith.constant 0 : i32
    return %c0_i32, %c0_i32_0 : i32, i32
  }
  func.func @transform_2(%arg0: i32, %arg1: i32) -> (i32, i32) {
    %c0_i32 = arith.constant 0 : i32
    %c0_i32_0 = arith.constant 0 : i32
    %c0_i32_1 = arith.constant 0 : i32
    return %c0_i32, %c0_i32_0 : i32, i32
  }
  func.func @transform_3(%arg0: i32, %arg1: i32) -> (i32, i32) {
    %c0_i32 = arith.constant 0 : i32
    %c0_i32_0 = arith.constant 0 : i32
    %c0_i32_1 = arith.constant 0 : i32
    return %c0_i32, %c0_i32_0 : i32, i32
  }
  func.func @transform_4(%arg0: i32, %arg1: i32) -> (i32, i32) {
    %c0_i32 = arith.constant 0 : i32
    %c0_i32_0 = arith.constant 0 : i32
    %c0_i32_1 = arith.constant 0 : i32
    return %c0_i32, %c0_i32_0 : i32, i32
  }
  func.func @transform_5(%arg0: i32, %arg1: i32) -> (i32, i32, i32) {
    %c0_i32 = arith.constant 0 : i32
    %c0_i32_0 = arith.constant 0 : i32
    return %arg0, %arg1, %c0_i32 : i32, i32, i32
  }
  func.func @transform_6(%arg0: i32, %arg1: i32) -> (i32, i32, i32) {
    %c0_i32 = arith.constant 0 : i32
    %c0_i32_0 = arith.constant 0 : i32
    return %arg0, %arg1, %c0_i32 : i32, i32, i32
  }
}

</mosaic_0001>

<llo_original>
// kernel: tpu_custom_call.1
$region0: #{tpu_custom_call.1}
  #allocation0 [shape = 'u32[]', space=smem, size = 0x4, offset = 0x4, fixed_abs, tag = 'smem constant byte address 0x4 - core index']
  #allocation1 [shape = 'u32[144,128]{1,0:T(1,128)}', space=vmem, size = 0x12000, scoped, tag = 'internal scratch']
  %s0 = inlined_call_operand.hbm [shape: bf16[2,256,128], index: 0, kind: input, shape index: {}]
  %s1 = inlined_call_operand.hbm [shape: bf16[128,128], index: 1, kind: input, shape index: {}]
  %s2 = inlined_call_operand.vmem [shape: f32[1,128], index: 2, kind: input, shape index: {}]
  %s3 = inlined_call_operand.hbm [shape: bf16[128,128], index: 3, kind: input, shape index: {}]
  %s4 = inlined_call_operand.vmem [shape: f32[1,128], index: 4, kind: input, shape index: {}]
  %s5 = inlined_call_operand.hbm [shape: bf16[2,256,128], index: 5, kind: output, shape index: {0}]
  %s6 = inlined_call_operand.hbm [shape: bf16[2,256,128], index: 6, kind: output, shape index: {1}]
  %7 = xla_tuple %s5, %s6
  %s8 = sld [smem:[#allocation0]]
  $region73: #{tpu_custom_call.1} parent=0
    _
  %s10 = ssub.s32 1, %s8
  %s11 = scalar_select 0, %s10, %s8
  $region1: #{tpu_custom_call.1} parent=0
    #allocation2 [shape = 'u8[131072]{0}', space=vmem, size = 0x20000, scoped, tag = 'input window, operand 0']
    #allocation3 [shape = 's32[2]{0}', space=sflag, size = 0x8, scoped, tag = 'scoped memory for tpu_custom_call.1']
    #allocation4 [shape = 's32[2]{0}', space=sflag, size = 0x8, scoped, tag = 'scoped memory for tpu_custom_call.1']
    #allocation5 [shape = 'u8[32768]{0}', space=vmem, size = 0x8000, scoped, tag = 'input window, operand 1, single buffered']
    #allocation6 [shape = 's32[1]{0}', space=sflag, size = 0x4, scoped, tag = 'scoped memory for tpu_custom_call.1']
    #allocation7 [shape = 'u8[32768]{0}', space=vmem, size = 0x8000, scoped, tag = 'input window, operand 3, single buffered']
    #allocation8 [shape = 'u8[131072]{0}', space=vmem, size = 0x20000, scoped, tag = 'output window, operand 0']
    #allocation9 [shape = 'u8[131072]{0}', space=vmem, size = 0x20000, scoped, tag = 'output window, operand 1']
    #allocation10 [shape = 's32[2]{0}', space=sflag, size = 0x8, scoped, tag = 'scoped memory for tpu_custom_call.1']
    %12 = vsyncpa [#allocation3], 0
    %s13 = scalar_lea.sflag [#allocation3], 1
    %14 = vsyncpa %s13, 0
    %15 = vsyncpa [#allocation6], 0
    %16 = vsyncpa [#allocation4], 0
    %s17 = scalar_lea.sflag [#allocation4], 1
    %18 = vsyncpa %s17, 0
    %19 = vsyncpa [#allocation10], 0
    %s20 = scalar_lea.sflag [#allocation10], 1
    %21 = vsyncpa %s20, 0
    loop: start=0, step=1, limit=4
    $region2: #{tpu_custom_call.1} parent=1 // loop_pre_header
      _
    $region3: #{tpu_custom_call.1} parent=1 // loop_header
      %s23 = sphi 0, %s27
      %p24 = scmp.ge.s32.totalorder %s23, 4
      %s30 = sphi 0, %s42
      %s31 = sphi 0, %s38
      %s32 = sphi 0, %s30
      %s33 = sphi 0, %s31
      %s34 = sphi 0, %s32
      %s35 = sphi 0, %s33
      %s47 = sphi 0, %s49
      %s50 = sphi 0, %s47
      %s51 = sphi 0, %s50
      %s67 = sphi 0, %s51
      %s71 = sphi 0, %s71
      %s73 = sphi 0, %s71
      %s74 = sphi 0, %s73
      %s88 = sphi 0, %s74
      %s92 = sphi 0, %s92
      %s94 = sphi 0, %s92
      %s95 = sphi 0, %s94
      %s109 = sphi 0, %s95
      %s113 = sphi 0, %s113
      %s115 = sphi 0, %s113
      %s116 = sphi 0, %s115
      %s130 = sphi 0, %s116
      %s134 = sphi 0, %s134
      %s136 = sphi 0, %s134
      %s137 = sphi 0, %s136
      %s151 = sphi 0, %s137
      %s159 = sphi 0, %s161
      %s162 = sphi 0, %s159
      %s163 = sphi 0, %s162
      %s179 = sphi 0, %s163
      %s187 = sphi 0, %s189
      %s190 = sphi 0, %s187
      %s191 = sphi 0, %s190
      %s207 = sphi 0, %s191
    $region4: #{tpu_custom_call.1} parent=1 // loop_header_branch
      %26 = sbr.rel (%p24) target = $region8
    $region5: #{tpu_custom_call.1} parent=1 // loop_body
      %s28 = ssub.s32 %s23, 1
      %s29 = ssub.s32 %s23, 2
      %s36 = sadd.s32 1, %s31
      %p37 = scmp.ge.s32.totalorder %s36, 1
      %s38 = scalar_select %p37, 0, %s36
      %s39 = sadd.s32 1, %s30
      %s40 = scalar_select %p37, %s39, %s30
      %p41 = scmp.ge.s32.totalorder %s40, 2
      %s42 = scalar_select %p41, 0, %s40
      %s43 = ssub.s32 %s30, %s42
      %s44 = ssub.s32 %s31, %s38
      %s45 = sor.u32 %s43, %s44
      %p46 = scmp.eq.s32.totalorder %s45, 0
      %s48 = sadd.s32 %s47, 1
      %s49 = scalar_select %p46, %s47, %s48
      %p52 = pneg %p46
      %p53 = scmp.eq.s32.totalorder %s23, 1
      %p54 = por %p52, %p53
      %p55 = scmp.ne.s32.totalorder %s47, %s50
      %p56 = scmp.eq.s32.totalorder %s23, 0
      %p57 = por %p55, %p56
      %p58 = scmp.ne.s32.totalorder %s47, %s50
      %p59 = scmp.eq.s32.totalorder %s28, 1
      %p60 = por %p58, %p59
      %p61 = scmp.ne.s32.totalorder %s50, %s51
      %p62 = scmp.eq.s32.totalorder %s28, 0
      %p63 = por %p61, %p62
      %p64 = scmp.ne.s32.totalorder %s50, %s51
      %p65 = scmp.eq.s32.totalorder %s29, 1
      %p66 = por %p64, %p65
      %p68 = scmp.ne.s32.totalorder %s51, %s67
      %p69 = scmp.eq.s32.totalorder %s29, 0
      %p70 = por %p68, %p69
      %s72 = sadd.s32 %s71, 1
      %p75 = scmp.eq.s32.totalorder %s23, 1
      %p76 = scmp.ne.s32.totalorder %s71, %s73
      %p77 = scmp.eq.s32.totalorder %s23, 0
      %p78 = por %p76, %p77
      %p79 = scmp.ne.s32.totalorder %s71, %s73
      %p80 = scmp.eq.s32.totalorder %s28, 1
      %p81 = por %p79, %p80
      %p82 = scmp.ne.s32.totalorder %s73, %s74
      %p83 = scmp.eq.s32.totalorder %s28, 0
      %p84 = por %p82, %p83
      %p85 = scmp.ne.s32.totalorder %s73, %s74
      %p86 = scmp.eq.s32.totalorder %s29, 1
      %p87 = por %p85, %p86
      %p89 = scmp.ne.s32.totalorder %s74, %s88
      %p90 = scmp.eq.s32.totalorder %s29, 0
      %p91 = por %p89, %p90
      %s93 = sadd.s32 %s92, 1
      %p96 = scmp.eq.s32.totalorder %s23, 1
      %p97 = scmp.ne.s32.totalorder %s92, %s94
      %p98 = scmp.eq.s32.totalorder %s23, 0
      %p99 = por %p97, %p98
      %p100 = scmp.ne.s32.totalorder %s92, %s94
      %p101 = scmp.eq.s32.totalorder %s28, 1
      %p102 = por %p100, %p101
      %p103 = scmp.ne.s32.totalorder %s94, %s95
      %p104 = scmp.eq.s32.totalorder %s28, 0
      %p105 = por %p103, %p104
      %p106 = scmp.ne.s32.totalorder %s94, %s95
      %p107 = scmp.eq.s32.totalorder %s29, 1
      %p108 = por %p106, %p107
      %p110 = scmp.ne.s32.totalorder %s95, %s109
      %p111 = scmp.eq.s32.totalorder %s29, 0
      %p112 = por %p110, %p111
      %s114 = sadd.s32 %s113, 1
      %p117 = scmp.eq.s32.totalorder %s23, 1
      %p118 = scmp.ne.s32.totalorder %s113, %s115
      %p119 = scmp.eq.s32.totalorder %s23, 0
      %p120 = por %p118, %p119
      %p121 = scmp.ne.s32.totalorder %s113, %s115
      %p122 = scmp.eq.s32.totalorder %s28, 1
      %p123 = por %p121, %p122
      %p124 = scmp.ne.s32.totalorder %s115, %s116
      %p125 = scmp.eq.s32.totalorder %s28, 0
      %p126 = por %p124, %p125
      %p127 = scmp.ne.s32.totalorder %s115, %s116
      %p128 = scmp.eq.s32.totalorder %s29, 1
      %p129 = por %p127, %p128
      %p131 = scmp.ne.s32.totalorder %s116, %s130
      %p132 = scmp.eq.s32.totalorder %s29, 0
      %p133 = por %p131, %p132
      %s135 = sadd.s32 %s134, 1
      %p138 = scmp.eq.s32.totalorder %s23, 1
      %p139 = scmp.ne.s32.totalorder %s134, %s136
      %p140 = scmp.eq.s32.totalorder %s23, 0
      %p141 = por %p139, %p140
      %p142 = scmp.ne.s32.totalorder %s134, %s136
      %p143 = scmp.eq.s32.totalorder %s28, 1
      %p144 = por %p142, %p143
      %p145 = scmp.ne.s32.totalorder %s136, %s137
      %p146 = scmp.eq.s32.totalorder %s28, 0
      %p147 = por %p145, %p146
      %p148 = scmp.ne.s32.totalorder %s136, %s137
      %p149 = scmp.eq.s32.totalorder %s29, 1
      %p150 = por %p148, %p149
      %p152 = scmp.ne.s32.totalorder %s137, %s151
      %p153 = scmp.eq.s32.totalorder %s29, 0
      %p154 = por %p152, %p153
      %s155 = ssub.s32 %s30, %s42
      %s156 = ssub.s32 %s31, %s38
      %s157 = sor.u32 %s155, %s156
      %p158 = scmp.eq.s32.totalorder %s157, 0
      %s160 = sadd.s32 %s159, 1
      %s161 = scalar_select %p158, %s159, %s160
      %p164 = pneg %p158
      %p165 = scmp.eq.s32.totalorder %s23, 1
      %p166 = por %p164, %p165
      %p167 = scmp.ne.s32.totalorder %s159, %s162
      %p168 = scmp.eq.s32.totalorder %s23, 0
      %p169 = por %p167, %p168
      %p170 = scmp.ne.s32.totalorder %s159, %s162
      %p171 = scmp.eq.s32.totalorder %s28, 1
      %p172 = por %p170, %p171
      %p173 = scmp.ne.s32.totalorder %s162, %s163
      %p174 = scmp.eq.s32.totalorder %s28, 0
      %p175 = por %p173, %p174
      %p176 = scmp.ne.s32.totalorder %s162, %s163
      %p177 = scmp.eq.s32.totalorder %s29, 1
      %p178 = por %p176, %p177
      %p180 = scmp.ne.s32.totalorder %s163, %s179
      %p181 = scmp.eq.s32.totalorder %s29, 0
      %p182 = por %p180, %p181
      %s183 = ssub.s32 %s30, %s42
      %s184 = ssub.s32 %s31, %s38
      %s185 = sor.u32 %s183, %s184
      %p186 = scmp.eq.s32.totalorder %s185, 0
      %s188 = sadd.s32 %s187, 1
      %s189 = scalar_select %p186, %s187, %s188
      %p192 = pneg %p186
      %p193 = scmp.eq.s32.totalorder %s23, 1
      %p194 = por %p192, %p193
      %p195 = scmp.ne.s32.totalorder %s187, %s190
      %p196 = scmp.eq.s32.totalorder %s23, 0
      %p197 = por %p195, %p196
      %p198 = scmp.ne.s32.totalorder %s187, %s190
      %p199 = scmp.eq.s32.totalorder %s28, 1
      %p200 = por %p198, %p199
      %p201 = scmp.ne.s32.totalorder %s190, %s191
      %p202 = scmp.eq.s32.totalorder %s28, 0
      %p203 = por %p201, %p202
      %p204 = scmp.ne.s32.totalorder %s190, %s191
      %p205 = scmp.eq.s32.totalorder %s29, 1
      %p206 = por %p204, %p205
      %p208 = scmp.ne.s32.totalorder %s191, %s207
      %p209 = scmp.eq.s32.totalorder %s29, 0
      %p210 = por %p208, %p209
      %p211 = scmp.le.s32.totalorder 1, %s23
      %p212 = scmp.lt.s32.totalorder %s23, 3
      %p213 = pnand %p211, %p212
      %p214 = pneg %p213
      // Predicated region
      $region9: #{tpu_custom_call.1} parent=5 // pred_check
        _
      $region10: #{tpu_custom_call.1} parent=5 // pred_check_branch
        %216 = sbr.rel (%p213) target = $region12
      $region11: #{tpu_custom_call.1} parent=5 // pred_region
        %s217 = ssub.s32 %s23, 1
        // Predicated region
        $region13: #{tpu_custom_call.1} parent=11 // pred_check
          %p218 = pneg %p84
        $region14: #{tpu_custom_call.1} parent=11 // pred_check_branch
          %220 = sbr.rel (%p218) target = $region16
        $region15: #{tpu_custom_call.1} parent=11 // pred_region
          %s222 = ssub.s32 1024, 1024
          %223 = vsyncadd [#allocation6], %s222
          %s224 = sshll.u32 [#allocation5], 4
          %s225 = int_to_ptr.vmem [resolvable:$true] %s224
          %230 = dma.hbm_to_vmem [thread:$0]  %s1, 1024, %s225, [#allocation6], 64, 64, 4
        $region16: #{tpu_custom_call.1} parent=11 // pred_fallthru
          _
        // Predicated region
        $region17: #{tpu_custom_call.1} parent=11 // pred_check
          %p231 = pneg %p105
        $region18: #{tpu_custom_call.1} parent=11 // pred_check_branch
          %233 = sbr.rel (%p231) target = $region20
        $region19: #{tpu_custom_call.1} parent=11 // pred_region
          _
        $region20: #{tpu_custom_call.1} parent=11 // pred_fallthru
          _
        // Predicated region
        $region21: #{tpu_custom_call.1} parent=11 // pred_check
          %p234 = pneg %p126
        $region22: #{tpu_custom_call.1} parent=11 // pred_check_branch
          %236 = sbr.rel (%p234) target = $region24
        $region23: #{tpu_custom_call.1} parent=11 // pred_region
          %s238 = ssub.s32 1024, 1024
          %239 = vsyncadd [#allocation6], %s238
          %s240 = sshll.u32 [#allocation7], 4
          %s241 = int_to_ptr.vmem [resolvable:$true] %s240
          %246 = dma.hbm_to_vmem [thread:$0]  %s3, 1024, %s241, [#allocation6], 64, 64, 4
        $region24: #{tpu_custom_call.1} parent=11 // pred_fallthru
          _
        // Predicated region
        $region25: #{tpu_custom_call.1} parent=11 // pred_check
          %p247 = pneg %p147
        $region26: #{tpu_custom_call.1} parent=11 // pred_check_branch
          %249 = sbr.rel (%p247) target = $region28
        $region27: #{tpu_custom_call.1} parent=11 // pred_region
          _
        $region28: #{tpu_custom_call.1} parent=11 // pred_fallthru
          _
      $region12: #{tpu_custom_call.1} parent=5 // pred_fallthru
        _
      %p250 = scmp.lt.s32.totalorder %s23, 2
      // Predicated region
      $region29: #{tpu_custom_call.1} parent=5 // pred_check
        %p251 = pneg %p250
      $region30: #{tpu_custom_call.1} parent=5 // pred_check_branch
        %253 = sbr.rel (%p251) target = $region32
      $region31: #{tpu_custom_call.1} parent=5 // pred_region
        // Predicated region
        $region33: #{tpu_custom_call.1} parent=31 // pred_check
          %p254 = pneg %p57
        $region34: #{tpu_custom_call.1} parent=31 // pred_check_branch
          %256 = sbr.rel (%p254) target = $region36
        $region35: #{tpu_custom_call.1} parent=31 // pred_region
          %s257 = sand.u32 %s47, 1
          %s258 = scalar_lea.sflag [#allocation3], %s257
          %s259 = sand.u32 %s47, 1
          %s260 = smul.addr %s259, 128
          %s261 = scalar_lea.vmem [#allocation2], %s260
          %s262 = smul.u32 32, %s31
          %s264 = ssub.s32 2048, 2048
          %265 = vsyncadd %s258, %s264
          %s266 = smul.addr %s30, 32
          %s267 = sadd.s32 %s262, %s266
          %s268 = smul.addr %s267, 64
          %s269 = scalar_lea.hbm %s0, %s268
          %s270 = sshll.u32 %s261, 4
          %s271 = int_to_ptr.vmem [resolvable:$true] %s270
          %276 = dma.hbm_to_vmem [thread:$0]  %s269, 2048, %s271, %s258, 64, 64, 4
        $region36: #{tpu_custom_call.1} parent=31 // pred_fallthru
          _
      $region32: #{tpu_custom_call.1} parent=5 // pred_fallthru
        _
      %p277 = scmp.le.s32.totalorder 1, %s23
      %p278 = scmp.lt.s32.totalorder %s23, 3
      %p279 = pnand %p277, %p278
      %p280 = pneg %p279
      // Predicated region
      $region37: #{tpu_custom_call.1} parent=5 // pred_check
        _
      $region38: #{tpu_custom_call.1} parent=5 // pred_check_branch
        %282 = sbr.rel (%p279) target = $region40
      $region39: #{tpu_custom_call.1} parent=5 // pred_region
        %s283 = ssub.s32 %s23, 1
        %s284 = sand.u32 %s50, 1
        %s285 = scalar_lea.sflag [#allocation3], %s284
        %s286 = sand.u32 %s50, 1
        %s287 = smul.addr %s286, 128
        %s288 = scalar_lea.vmem [#allocation2], %s287
        // Predicated region
        $region41: #{tpu_custom_call.1} parent=39 // pred_check
          %p289 = pneg %p63
        $region42: #{tpu_custom_call.1} parent=39 // pred_check_branch
          %291 = sbr.rel (%p289) target = $region44
        $region43: #{tpu_custom_call.1} parent=39 // pred_region
          %292 = dma.done %s285, 2048
        $region44: #{tpu_custom_call.1} parent=39 // pred_fallthru
          _
        // Predicated region
        $region45: #{tpu_custom_call.1} parent=39 // pred_check
          %p293 = pneg %p84
        $region46: #{tpu_custom_call.1} parent=39 // pred_check_branch
          %295 = sbr.rel (%p293) target = $region48
        $region47: #{tpu_custom_call.1} parent=39 // pred_region
          %296 = dma.done [#allocation6], 1024
        $region48: #{tpu_custom_call.1} parent=39 // pred_fallthru
          _
        // Predicated region
        $region49: #{tpu_custom_call.1} parent=39 // pred_check
          %p297 = pneg %p126
        $region50: #{tpu_custom_call.1} parent=39 // pred_check_branch
          %299 = sbr.rel (%p297) target = $region52
        $region51: #{tpu_custom_call.1} parent=39 // pred_region
          %300 = dma.done [#allocation6], 1024
        $region52: #{tpu_custom_call.1} parent=39 // pred_fallthru
          _
        %s301 = sand.u32 %s50, 1
        %s302 = scalar_lea.sflag [#allocation3], %s301
        %s303 = sand.u32 %s50, 1
        %s304 = smul.addr %s303, 128
        %s305 = scalar_lea.vmem [#allocation2], %s304
        %p306 = pneg %p63
        %p307 = pneg %p60
        %p308 = pneg %p84
        %p309 = pneg %p81
        %p310 = pneg %p105
        %p311 = pneg %p102
        %p312 = pneg %p126
        %p313 = pneg %p123
        %p314 = pneg %p147
        %p315 = pneg %p144
        %p316 = pneg %p175
        %p317 = pneg %p172
        %s318 = sand.u32 %s162, 1
        %s319 = scalar_lea.sflag [#allocation4], %s318
        %s320 = sand.u32 %s162, 1
        %s321 = smul.addr %s320, 128
        %s322 = scalar_lea.vmem [#allocation8], %s321
        %p323 = pneg %p203
        %p324 = pneg %p200
        %s325 = sand.u32 %s190, 1
        %s326 = scalar_lea.sflag [#allocation10], %s325
        %s327 = sand.u32 %s190, 1
        %s328 = smul.addr %s327, 128
        %s329 = scalar_lea.vmem [#allocation9], %s328
        %s330 = smul.u32 32, %s33
        %s331 = smul.u32 32, %s33
        %s332 = smul.u32 32, %s33
        %v334 = vld [vmem:[%s288] sm:$0xf]
        %v335 = vld [vmem:[%s288 + $0x4] sm:$0xf]
        %v336 = vld [vmem:[%s288 + $0x8] sm:$0xf]
        %v337 = vld [vmem:[%s288 + $0xc] sm:$0xf]
        %v338 = vld [vmem:[%s288 + $0x10] sm:$0xf]
        %v339 = vld [vmem:[%s288 + $0x14] sm:$0xf]
        %v340 = vld [vmem:[%s288 + $0x18] sm:$0xf]
        %v341 = vld [vmem:[%s288 + $0x1c] sm:$0xf]
        %v342 = vld [vmem:[%s288 + $0x20] sm:$0xf]
        %v343 = vld [vmem:[%s288 + $0x24] sm:$0xf]
        %v344 = vld [vmem:[%s288 + $0x28] sm:$0xf]
        %v345 = vld [vmem:[%s288 + $0x2c] sm:$0xf]
        %v346 = vld [vmem:[%s288 + $0x30] sm:$0xf]
        %v347 = vld [vmem:[%s288 + $0x34] sm:$0xf]
        %v348 = vld [vmem:[%s288 + $0x38] sm:$0xf]
        %v349 = vld [vmem:[%s288 + $0x3c] sm:$0xf]
        %v350 = vld [vmem:[%s288 + $0x40] sm:$0xf]
        %v351 = vld [vmem:[%s288 + $0x44] sm:$0xf]
        %v352 = vld [vmem:[%s288 + $0x48] sm:$0xf]
        %v353 = vld [vmem:[%s288 + $0x4c] sm:$0xf]
        %v354 = vld [vmem:[%s288 + $0x50] sm:$0xf]
        %v355 = vld [vmem:[%s288 + $0x54] sm:$0xf]
        %v356 = vld [vmem:[%s288 + $0x58] sm:$0xf]
        %v357 = vld [vmem:[%s288 + $0x5c] sm:$0xf]
        %v358 = vld [vmem:[%s288 + $0x60] sm:$0xf]
        %v359 = vld [vmem:[%s288 + $0x64] sm:$0xf]
        %v360 = vld [vmem:[%s288 + $0x68] sm:$0xf]
        %v361 = vld [vmem:[%s288 + $0x6c] sm:$0xf]
        %v362 = vld [vmem:[%s288 + $0x70] sm:$0xf]
        %v363 = vld [vmem:[%s288 + $0x74] sm:$0xf]
        %v364 = vld [vmem:[%s288 + $0x78] sm:$0xf]
        %v365 = vld [vmem:[%s288 + $0x7c] sm:$0xf]
        %v366 = vld [vmem:[#allocation5] sm:$0xf]
        %v367 = vld [vmem:[#allocation5 + $0x4] sm:$0xf]
        %v368 = vld [vmem:[#allocation5 + $0x8] sm:$0xf]
        %v369 = vld [vmem:[#allocation5 + $0xc] sm:$0xf]
        %v370 = vld [vmem:[#allocation5 + $0x10] sm:$0xf]
        %v371 = vld [vmem:[#allocation5 + $0x14] sm:$0xf]
        %v372 = vld [vmem:[#allocation5 + $0x18] sm:$0xf]
        %v373 = vld [vmem:[#allocation5 + $0x1c] sm:$0xf]
        %v374 = vld [vmem:[#allocation5 + $0x20] sm:$0xf]
        %v375 = vld [vmem:[#allocation5 + $0x24] sm:$0xf]
        %v376 = vld [vmem:[#allocation5 + $0x28] sm:$0xf]
        %v377 = vld [vmem:[#allocation5 + $0x2c] sm:$0xf]
        %v378 = vld [vmem:[#allocation5 + $0x30] sm:$0xf]
        %v379 = vld [vmem:[#allocation5 + $0x34] sm:$0xf]
        %v380 = vld [vmem:[#allocation5 + $0x38] sm:$0xf]
        %v381 = vld [vmem:[#allocation5 + $0x3c] sm:$0xf]
        %v382 = vld [vmem:[%s2] sm:$0x1]
        %v384 = vlaneseq
        %v385 = vshrl.u32 %v384, 7
        %v386 = vsub.s32 0, %v385
        %v387 = vrot.slane %v382, %v386
        %v421 = vunpack.c.l.b16 %v334
        %v422 = vunpack.c.l.b16 %v335
        %v423 = vunpack.c.l.b16 %v336
        %v424 = vunpack.c.l.b16 %v337
        %v425 = vunpack.c.l.b16 %v338
        %v426 = vunpack.c.l.b16 %v339
        %v427 = vunpack.c.l.b16 %v340
        %v428 = vunpack.c.l.b16 %v341
        %v429 = vunpack.c.l.b16 %v342
        %v430 = vunpack.c.l.b16 %v343
        %v431 = vunpack.c.l.b16 %v344
        %v432 = vunpack.c.l.b16 %v345
        %v433 = vunpack.c.l.b16 %v346
        %v434 = vunpack.c.l.b16 %v347
        %v435 = vunpack.c.l.b16 %v348
        %v436 = vunpack.c.l.b16 %v349
        %v437 = vunpack.c.l.b16 %v350
        %v438 = vunpack.c.l.b16 %v351
        %v439 = vunpack.c.l.b16 %v352
        %v440 = vunpack.c.l.b16 %v353
        %v441 = vunpack.c.l.b16 %v354
        %v442 = vunpack.c.l.b16 %v355
        %v443 = vunpack.c.l.b16 %v356
        %v444 = vunpack.c.l.b16 %v357
        %v445 = vunpack.c.l.b16 %v358
        %v446 = vunpack.c.l.b16 %v359
        %v447 = vunpack.c.l.b16 %v360
        %v448 = vunpack.c.l.b16 %v361
        %v449 = vunpack.c.l.b16 %v362
        %v450 = vunpack.c.l.b16 %v363
        %v451 = vunpack.c.l.b16 %v364
        %v452 = vunpack.c.l.b16 %v365
        %v453 = vpack.c.b16 %v422, %v421
        %v454 = vpack.c.b16 %v424, %v423
        %v455 = vpack.c.b16 %v426, %v425
        %v456 = vpack.c.b16 %v428, %v427
        %v457 = vpack.c.b16 %v430, %v429
        %v458 = vpack.c.b16 %v432, %v431
        %v459 = vpack.c.b16 %v434, %v433
        %v460 = vpack.c.b16 %v436, %v435
        %v461 = vpack.c.b16 %v438, %v437
        %v462 = vpack.c.b16 %v440, %v439
        %v463 = vpack.c.b16 %v442, %v441
        %v464 = vpack.c.b16 %v444, %v443
        %v465 = vpack.c.b16 %v446, %v445
        %v466 = vpack.c.b16 %v448, %v447
        %v467 = vpack.c.b16 %v450, %v449
        %v468 = vpack.c.b16 %v452, %v451
        %v501 = vunpack.c.l.b16 %v366
        %v502 = vunpack.c.l.b16 %v367
        %v503 = vunpack.c.l.b16 %v368
        %v504 = vunpack.c.l.b16 %v369
        %v505 = vunpack.c.l.b16 %v370
        %v506 = vunpack.c.l.b16 %v371
        %v507 = vunpack.c.l.b16 %v372
        %v508 = vunpack.c.l.b16 %v373
        %v509 = vunpack.c.l.b16 %v374
        %v510 = vunpack.c.l.b16 %v375
        %v511 = vunpack.c.l.b16 %v376
        %v512 = vunpack.c.l.b16 %v377
        %v513 = vunpack.c.l.b16 %v378
        %v514 = vunpack.c.l.b16 %v379
        %v515 = vunpack.c.l.b16 %v380
        %v516 = vunpack.c.l.b16 %v381
        %v517 = vpack.c.b16 %v502, %v501
        %v518 = vpack.c.b16 %v504, %v503
        %v519 = vpack.c.b16 %v506, %v505
        %v520 = vpack.c.b16 %v508, %v507
        %v521 = vpack.c.b16 %v510, %v509
        %v522 = vpack.c.b16 %v512, %v511
        %v523 = vpack.c.b16 %v514, %v513
        %v524 = vpack.c.b16 %v516, %v515
        %533 = vmatprep.subr.bf16.mxu0 0
        %534 = vmatpush1.bf16.msra.mxu0 %v524
        %535 = vmatprep.subr.bf16.mxu0 0
        %536 = vmatpush1.bf16.msra.mxu0 %v523
        %537 = vmatprep.subr.bf16.mxu0 0
        %538 = vmatpush1.bf16.msra.mxu0 %v522
        %539 = vmatprep.subr.bf16.mxu0 0
        %540 = vmatpush1.bf16.msra.mxu0 %v521
        %541 = vmatprep.subr.bf16.mxu0 0
        %542 = vmatpush1.bf16.msra.mxu0 %v520
        %543 = vmatprep.subr.bf16.mxu0 0
        %544 = vmatpush1.bf16.msra.mxu0 %v519
        %545 = vmatprep.subr.bf16.mxu0 0
        %546 = vmatpush1.bf16.msra.mxu0 %v518
        %547 = vmatprep.subr.bf16.mxu0 0
        %548 = vmatpush1.bf16.msra.mxu0 %v517
        %549 = vmatprep.subr.bf16.mxu0 0
        %550 = vmatpush2.bf16.msra.mxu0 0
        %551 = vmatprep.subr.bf16.mxu0 0
        %552 = vmatpush2.bf16.msra.mxu0 0
        %553 = vmatprep.subr.bf16.mxu0 0
        %554 = vmatpush2.bf16.msra.mxu0 0
        %555 = vmatprep.subr.bf16.mxu0 0
        %556 = vmatpush2.bf16.msra.mxu0 0
        %557 = vmatprep.subr.bf16.mxu0 0
        %558 = vmatpush2.bf16.msra.mxu0 0
        %559 = vmatprep.subr.bf16.mxu0 0
        %560 = vmatpush2.bf16.msra.mxu0 0
        %561 = vmatprep.subr.bf16.mxu0 0
        %562 = vmatpush2.bf16.msra.mxu0 0
        %563 = vmatprep.subr.bf16.mxu0 0
        %564 = vmatpush2.bf16.msra.mxu0 0
        %565 = vmatprep.mubr.bf16.mxu0 0
        %566 = vmatmul.mubr.bf16.gmra.mxu0 %v453
        %v567 = vpop.f32.mrf.mxu0
        %v568 = vadd.f32 %v387, %v567
        %v569 = vpop.f32.mrf.mxu0
        %v570 = vpop.f32.mrf.mxu0
        %v571 = vadd.f32 %v387, %v570
        %v572 = vpop.f32.mrf.mxu0
        %573 = vmatprep.mubr.bf16.mxu0 0
        %574 = vmatmul.mubr.bf16.gmra.mxu0 %v454
        %v575 = vpop.f32.mrf.mxu0
        %v576 = vadd.f32 %v387, %v575
        %v577 = vpop.f32.mrf.mxu0
        %v578 = vpop.f32.mrf.mxu0
        %v579 = vadd.f32 %v387, %v578
        %v580 = vpop.f32.mrf.mxu0
        %581 = vmatprep.mubr.bf16.mxu0 0
        %582 = vmatmul.mubr.bf16.gmra.mxu0 %v455
        %v583 = vpop.f32.mrf.mxu0
        %v584 = vadd.f32 %v387, %v583
        %v585 = vpop.f32.mrf.mxu0
        %v586 = vpop.f32.mrf.mxu0
        %v587 = vadd.f32 %v387, %v586
        %v588 = vpop.f32.mrf.mxu0
        %589 = vmatprep.mubr.bf16.mxu0 0
        %590 = vmatmul.mubr.bf16.gmra.mxu0 %v456
        %v591 = vpop.f32.mrf.mxu0
        %v592 = vadd.f32 %v387, %v591
        %v593 = vpop.f32.mrf.mxu0
        %v594 = vpop.f32.mrf.mxu0
        %v595 = vadd.f32 %v387, %v594
        %v596 = vpop.f32.mrf.mxu0
        %597 = vmatprep.mubr.bf16.mxu0 0
        %598 = vmatmul.mubr.bf16.gmra.mxu0 %v457
        %v599 = vpop.f32.mrf.mxu0
        %v600 = vadd.f32 %v387, %v599
        %v601 = vpop.f32.mrf.mxu0
        %v602 = vpop.f32.mrf.mxu0
        %v603 = vadd.f32 %v387, %v602
        %v604 = vpop.f32.mrf.mxu0
        %605 = vmatprep.mubr.bf16.mxu0 0
        %606 = vmatmul.mubr.bf16.gmra.mxu0 %v458
        %v607 = vpop.f32.mrf.mxu0
        %v608 = vadd.f32 %v387, %v607
        %v609 = vpop.f32.mrf.mxu0
        %v610 = vpop.f32.mrf.mxu0
        %v611 = vadd.f32 %v387, %v610
        %v612 = vpop.f32.mrf.mxu0
        %613 = vmatprep.mubr.bf16.mxu0 0
        %614 = vmatmul.mubr.bf16.gmra.mxu0 %v459
        %v615 = vpop.f32.mrf.mxu0
        %v616 = vadd.f32 %v387, %v615
        %v617 = vpop.f32.mrf.mxu0
        %v618 = vpop.f32.mrf.mxu0
        %v619 = vadd.f32 %v387, %v618
        %v620 = vpop.f32.mrf.mxu0
        %621 = vmatprep.mubr.bf16.mxu0 0
        %622 = vmatmul.mubr.bf16.gmra.mxu0 %v460
        %v623 = vpop.f32.mrf.mxu0
        %v624 = vadd.f32 %v387, %v623
        %v625 = vpop.f32.mrf.mxu0
        %v626 = vpop.f32.mrf.mxu0
        %v627 = vadd.f32 %v387, %v626
        %v628 = vpop.f32.mrf.mxu0
        %629 = vmatprep.mubr.bf16.mxu0 0
        %630 = vmatmul.mubr.bf16.gmra.mxu0 %v461
        %v631 = vpop.f32.mrf.mxu0
        %v632 = vadd.f32 %v387, %v631
        %v633 = vpop.f32.mrf.mxu0
        %v634 = vpop.f32.mrf.mxu0
        %v635 = vadd.f32 %v387, %v634
        %v636 = vpop.f32.mrf.mxu0
        %637 = vmatprep.mubr.bf16.mxu0 0
        %638 = vmatmul.mubr.bf16.gmra.mxu0 %v462
        %v639 = vpop.f32.mrf.mxu0
        %v640 = vadd.f32 %v387, %v639
        %v641 = vpop.f32.mrf.mxu0
        %v642 = vpop.f32.mrf.mxu0
        %v643 = vadd.f32 %v387, %v642
        %v644 = vpop.f32.mrf.mxu0
        %645 = vmatprep.mubr.bf16.mxu0 0
        %646 = vmatmul.mubr.bf16.gmra.mxu0 %v463
        %v647 = vpop.f32.mrf.mxu0
        %v648 = vadd.f32 %v387, %v647
        %v649 = vpop.f32.mrf.mxu0
        %v650 = vpop.f32.mrf.mxu0
        %v651 = vadd.f32 %v387, %v650
        %v652 = vpop.f32.mrf.mxu0
        %653 = vmatprep.mubr.bf16.mxu0 0
        %654 = vmatmul.mubr.bf16.gmra.mxu0 %v464
        %v655 = vpop.f32.mrf.mxu0
        %v656 = vadd.f32 %v387, %v655
        %v657 = vpop.f32.mrf.mxu0
        %v658 = vpop.f32.mrf.mxu0
        %v659 = vadd.f32 %v387, %v658
        %v660 = vpop.f32.mrf.mxu0
        %661 = vmatprep.mubr.bf16.mxu0 0
        %662 = vmatmul.mubr.bf16.gmra.mxu0 %v465
        %v663 = vpop.f32.mrf.mxu0
        %v664 = vadd.f32 %v387, %v663
        %v665 = vpop.f32.mrf.mxu0
        %v666 = vpop.f32.mrf.mxu0
        %v667 = vadd.f32 %v387, %v666
        %v668 = vpop.f32.mrf.mxu0
        %669 = vmatprep.mubr.bf16.mxu0 0
        %670 = vmatmul.mubr.bf16.gmra.mxu0 %v466
        %v671 = vpop.f32.mrf.mxu0
        %v672 = vadd.f32 %v387, %v671
        %v673 = vpop.f32.mrf.mxu0
        %v674 = vpop.f32.mrf.mxu0
        %v675 = vadd.f32 %v387, %v674
        %v676 = vpop.f32.mrf.mxu0
        %677 = vmatprep.mubr.bf16.mxu0 0
        %678 = vmatmul.mubr.bf16.gmra.mxu0 %v467
        %v679 = vpop.f32.mrf.mxu0
        %v680 = vadd.f32 %v387, %v679
        %v681 = vpop.f32.mrf.mxu0
        %v682 = vpop.f32.mrf.mxu0
        %v683 = vadd.f32 %v387, %v682
        %v684 = vpop.f32.mrf.mxu0
        %685 = vmatprep.mubr.bf16.mxu0 0
        %686 = vmatmul.mubr.bf16.gmra.mxu0 %v468
        %v687 = vpop.f32.mrf.mxu0
        %v688 = vadd.f32 %v387, %v687
        %v689 = vpop.f32.mrf.mxu0
        %v690 = vpop.f32.mrf.mxu0
        %v691 = vadd.f32 %v387, %v690
        %v692 = vpop.f32.mrf.mxu0
        %693 = vdwg.mxu0
        %v694 = vmul.f32 %v568, 0.01
        %v695 = vmul.f32 %v571, 0.01
        %v696 = vmul.f32 %v576, 0.01
        %v697 = vmul.f32 %v579, 0.01
        %v698 = vmul.f32 %v584, 0.01
        %v699 = vmul.f32 %v587, 0.01
        %v700 = vmul.f32 %v592, 0.01
        %v701 = vmul.f32 %v595, 0.01
        %v702 = vmul.f32 %v600, 0.01
        %v703 = vmul.f32 %v603, 0.01
        %v704 = vmul.f32 %v608, 0.01
        %v705 = vmul.f32 %v611, 0.01
        %v706 = vmul.f32 %v616, 0.01
        %v707 = vmul.f32 %v619, 0.01
        %v708 = vmul.f32 %v624, 0.01
        %v709 = vmul.f32 %v627, 0.01
        %v710 = vmul.f32 %v632, 0.01
        %v711 = vmul.f32 %v635, 0.01
        %v712 = vmul.f32 %v640, 0.01
        %v713 = vmul.f32 %v643, 0.01
        %v714 = vmul.f32 %v648, 0.01
        %v715 = vmul.f32 %v651, 0.01
        %v716 = vmul.f32 %v656, 0.01
        %v717 = vmul.f32 %v659, 0.01
        %v718 = vmul.f32 %v664, 0.01
        %v719 = vmul.f32 %v667, 0.01
        %v720 = vmul.f32 %v672, 0.01
        %v721 = vmul.f32 %v675, 0.01
        %v722 = vmul.f32 %v680, 0.01
        %v723 = vmul.f32 %v683, 0.01
        %v724 = vmul.f32 %v688, 0.01
        %v725 = vmul.f32 %v691, 0.01
        %v726 = vmax.f32 %v568, %v694
        %v727 = vmax.f32 %v571, %v695
        %v728 = vmax.f32 %v576, %v696
        %v729 = vmax.f32 %v579, %v697
        %v730 = vmax.f32 %v584, %v698
        %v731 = vmax.f32 %v587, %v699
        %v732 = vmax.f32 %v592, %v700
        %v733 = vmax.f32 %v595, %v701
        %v734 = vmax.f32 %v600, %v702
        %v735 = vmax.f32 %v603, %v703
        %v736 = vmax.f32 %v608, %v704
        %v737 = vmax.f32 %v611, %v705
        %v738 = vmax.f32 %v616, %v706
        %v739 = vmax.f32 %v619, %v707
        %v740 = vmax.f32 %v624, %v708
        %v741 = vmax.f32 %v627, %v709
        %v742 = vmax.f32 %v632, %v710
        %v743 = vmax.f32 %v635, %v711
        %v744 = vmax.f32 %v640, %v712
        %v745 = vmax.f32 %v643, %v713
        %v746 = vmax.f32 %v648, %v714
        %v747 = vmax.f32 %v651, %v715
        %v748 = vmax.f32 %v656, %v716
        %v749 = vmax.f32 %v659, %v717
        %v750 = vmax.f32 %v664, %v718
        %v751 = vmax.f32 %v667, %v719
        %v752 = vmax.f32 %v672, %v720
        %v753 = vmax.f32 %v675, %v721
        %v754 = vmax.f32 %v680, %v722
        %v755 = vmax.f32 %v683, %v723
        %v756 = vmax.f32 %v688, %v724
        %v757 = vmax.f32 %v691, %v725
        %v758 = vpack.c.bf16 %v727, %v726
        %v759 = vpack.c.bf16 %v729, %v728
        %v760 = vpack.c.bf16 %v731, %v730
        %v761 = vpack.c.bf16 %v733, %v732
        %v762 = vpack.c.bf16 %v735, %v734
        %v763 = vpack.c.bf16 %v737, %v736
        %v764 = vpack.c.bf16 %v739, %v738
        %v765 = vpack.c.bf16 %v741, %v740
        %v766 = vpack.c.bf16 %v743, %v742
        %v767 = vpack.c.bf16 %v745, %v744
        %v768 = vpack.c.bf16 %v747, %v746
        %v769 = vpack.c.bf16 %v749, %v748
        %v770 = vpack.c.bf16 %v751, %v750
        %v771 = vpack.c.bf16 %v753, %v752
        %v772 = vpack.c.bf16 %v755, %v754
        %v773 = vpack.c.bf16 %v757, %v756
        %v790 = vunpack.c.l.b16 %v758
        %v791 = vunpack.c.h.b16 %v758
        %v792 = vunpack.c.l.b16 %v759
        %v793 = vunpack.c.h.b16 %v759
        %v794 = vunpack.c.l.b16 %v760
        %v795 = vunpack.c.h.b16 %v760
        %v796 = vunpack.c.l.b16 %v761
        %v797 = vunpack.c.h.b16 %v761
        %v798 = vunpack.c.l.b16 %v762
        %v799 = vunpack.c.h.b16 %v762
        %v800 = vunpack.c.l.b16 %v763
        %v801 = vunpack.c.h.b16 %v763
        %v802 = vunpack.c.l.b16 %v764
        %v803 = vunpack.c.h.b16 %v764
        %v804 = vunpack.c.l.b16 %v765
        %v805 = vunpack.c.h.b16 %v765
        %v806 = vunpack.c.l.b16 %v766
        %v807 = vunpack.c.h.b16 %v766
        %v808 = vunpack.c.l.b16 %v767
        %v809 = vunpack.c.h.b16 %v767
        %v810 = vunpack.c.l.b16 %v768
        %v811 = vunpack.c.h.b16 %v768
        %v812 = vunpack.c.l.b16 %v769
        %v813 = vunpack.c.h.b16 %v769
        %v814 = vunpack.c.l.b16 %v770
        %v815 = vunpack.c.h.b16 %v770
        %v816 = vunpack.c.l.b16 %v771
        %v817 = vunpack.c.h.b16 %v771
        %v818 = vunpack.c.l.b16 %v772
        %v819 = vunpack.c.h.b16 %v772
        %v820 = vunpack.c.l.b16 %v773
        %v821 = vunpack.c.h.b16 %v773
        %v822 = vpack.c.b16 %v790, %v790
        %v823 = vpack.c.b16 %v791, %v791
        %v824 = vpack.c.b16 %v792, %v792
        %v825 = vpack.c.b16 %v793, %v793
        %v826 = vpack.c.b16 %v794, %v794
        %v827 = vpack.c.b16 %v795, %v795
        %v828 = vpack.c.b16 %v796, %v796
        %v829 = vpack.c.b16 %v797, %v797
        %v830 = vpack.c.b16 %v798, %v798
        %v831 = vpack.c.b16 %v799, %v799
        %v832 = vpack.c.b16 %v800, %v800
        %v833 = vpack.c.b16 %v801, %v801
        %v834 = vpack.c.b16 %v802, %v802
        %v835 = vpack.c.b16 %v803, %v803
        %v836 = vpack.c.b16 %v804, %v804
        %v837 = vpack.c.b16 %v805, %v805
        %v838 = vpack.c.b16 %v806, %v806
        %v839 = vpack.c.b16 %v807, %v807
        %v840 = vpack.c.b16 %v808, %v808
        %v841 = vpack.c.b16 %v809, %v809
        %v842 = vpack.c.b16 %v810, %v810
        %v843 = vpack.c.b16 %v811, %v811
        %v844 = vpack.c.b16 %v812, %v812
        %v845 = vpack.c.b16 %v813, %v813
        %v846 = vpack.c.b16 %v814, %v814
        %v847 = vpack.c.b16 %v815, %v815
        %v848 = vpack.c.b16 %v816, %v816
        %v849 = vpack.c.b16 %v817, %v817
        %v850 = vpack.c.b16 %v818, %v818
        %v851 = vpack.c.b16 %v819, %v819
        %v852 = vpack.c.b16 %v820, %v820
        %v853 = vpack.c.b16 %v821, %v821
        %886 = vst [vmem:[%s322] sm:$0xf] %v822
        %887 = vst [vmem:[%s322 + $0x4] sm:$0xf] %v823
        %888 = vst [vmem:[%s322 + $0x8] sm:$0xf] %v824
        %889 = vst [vmem:[%s322 + $0xc] sm:$0xf] %v825
        %890 = vst [vmem:[%s322 + $0x10] sm:$0xf] %v826
        %891 = vst [vmem:[%s322 + $0x14] sm:$0xf] %v827
        %892 = vst [vmem:[%s322 + $0x18] sm:$0xf] %v828
        %893 = vst [vmem:[%s322 + $0x1c] sm:$0xf] %v829
        %894 = vst [vmem:[%s322 + $0x20] sm:$0xf] %v830
        %895 = vst [vmem:[%s322 + $0x24] sm:$0xf] %v831
        %896 = vst [vmem:[%s322 + $0x28] sm:$0xf] %v832
        %897 = vst [vmem:[%s322 + $0x2c] sm:$0xf] %v833
        %898 = vst [vmem:[%s322 + $0x30] sm:$0xf] %v834
        %899 = vst [vmem:[%s322 + $0x34] sm:$0xf] %v835
        %900 = vst [vmem:[%s322 + $0x38] sm:$0xf] %v836
        %901 = vst [vmem:[%s322 + $0x3c] sm:$0xf] %v837
        %902 = vst [vmem:[%s322 + $0x40] sm:$0xf] %v838
        %903 = vst [vmem:[%s322 + $0x44] sm:$0xf] %v839
        %904 = vst [vmem:[%s322 + $0x48] sm:$0xf] %v840
        %905 = vst [vmem:[%s322 + $0x4c] sm:$0xf] %v841
        %906 = vst [vmem:[%s322 + $0x50] sm:$0xf] %v842
        %907 = vst [vmem:[%s322 + $0x54] sm:$0xf] %v843
        %908 = vst [vmem:[%s322 + $0x58] sm:$0xf] %v844
        %909 = vst [vmem:[%s322 + $0x5c] sm:$0xf] %v845
        %910 = vst [vmem:[%s322 + $0x60] sm:$0xf] %v846
        %911 = vst [vmem:[%s322 + $0x64] sm:$0xf] %v847
        %912 = vst [vmem:[%s322 + $0x68] sm:$0xf] %v848
        %913 = vst [vmem:[%s322 + $0x6c] sm:$0xf] %v849
        %914 = vst [vmem:[%s322 + $0x70] sm:$0xf] %v850
        %915 = vst [vmem:[%s322 + $0x74] sm:$0xf] %v851
        %916 = vst [vmem:[%s322 + $0x78] sm:$0xf] %v852
        %917 = vst [vmem:[%s322 + $0x7c] sm:$0xf] %v853
        %v918 = vld [vmem:[#allocation7] sm:$0xf]
        %v919 = vld [vmem:[#allocation7 + $0x4] sm:$0xf]
        %v920 = vld [vmem:[#allocation7 + $0x8] sm:$0xf]
        %v921 = vld [vmem:[#allocation7 + $0xc] sm:$0xf]
        %v922 = vld [vmem:[#allocation7 + $0x10] sm:$0xf]
        %v923 = vld [vmem:[#allocation7 + $0x14] sm:$0xf]
        %v924 = vld [vmem:[#allocation7 + $0x18] sm:$0xf]
        %v925 = vld [vmem:[#allocation7 + $0x1c] sm:$0xf]
        %v926 = vld [vmem:[#allocation7 + $0x20] sm:$0xf]
        %v927 = vld [vmem:[#allocation7 + $0x24] sm:$0xf]
        %v928 = vld [vmem:[#allocation7 + $0x28] sm:$0xf]
        %v929 = vld [vmem:[#allocation7 + $0x2c] sm:$0xf]
        %v930 = vld [vmem:[#allocation7 + $0x30] sm:$0xf]
        %v931 = vld [vmem:[#allocation7 + $0x34] sm:$0xf]
        %v932 = vld [vmem:[#allocation7 + $0x38] sm:$0xf]
        %v933 = vld [vmem:[#allocation7 + $0x3c] sm:$0xf]
        %v934 = vld [vmem:[%s4] sm:$0x1]
        %v936 = vlaneseq
        %v937 = vshrl.u32 %v936, 7
        %v938 = vsub.s32 0, %v937
        %v939 = vrot.slane %v934, %v938
        %v957 = vunpack.c.l.b16 %v918
        %v958 = vunpack.c.l.b16 %v919
        %v959 = vunpack.c.l.b16 %v920
        %v960 = vunpack.c.l.b16 %v921
        %v961 = vunpack.c.l.b16 %v922
        %v962 = vunpack.c.l.b16 %v923
        %v963 = vunpack.c.l.b16 %v924
        %v964 = vunpack.c.l.b16 %v925
        %v965 = vunpack.c.l.b16 %v926
        %v966 = vunpack.c.l.b16 %v927
        %v967 = vunpack.c.l.b16 %v928
        %v968 = vunpack.c.l.b16 %v929
        %v969 = vunpack.c.l.b16 %v930
        %v970 = vunpack.c.l.b16 %v931
        %v971 = vunpack.c.l.b16 %v932
        %v972 = vunpack.c.l.b16 %v933
        %v973 = vpack.c.b16 %v958, %v957
        %v974 = vpack.c.b16 %v960, %v959
        %v975 = vpack.c.b16 %v962, %v961
        %v976 = vpack.c.b16 %v964, %v963
        %v977 = vpack.c.b16 %v966, %v965
        %v978 = vpack.c.b16 %v968, %v967
        %v979 = vpack.c.b16 %v970, %v969
        %v980 = vpack.c.b16 %v972, %v971
        %989 = vmatprep.subr.bf16.mxu0 0
        %990 = vmatpush1.bf16.msra.mxu0 %v980
        %991 = vmatprep.subr.bf16.mxu0 0
        %992 = vmatpush1.bf16.msra.mxu0 %v979
        %993 = vmatprep.subr.bf16.mxu0 0
        %994 = vmatpush1.bf16.msra.mxu0 %v978
        %995 = vmatprep.subr.bf16.mxu0 0
        %996 = vmatpush1.bf16.msra.mxu0 %v977
        %997 = vmatprep.subr.bf16.mxu0 0
        %998 = vmatpush1.bf16.msra.mxu0 %v976
        %999 = vmatprep.subr.bf16.mxu0 0
        %1000 = vmatpush1.bf16.msra.mxu0 %v975
        %1001 = vmatprep.subr.bf16.mxu0 0
        %1002 = vmatpush1.bf16.msra.mxu0 %v974
        %1003 = vmatprep.subr.bf16.mxu0 0
        %1004 = vmatpush1.bf16.msra.mxu0 %v973
        %1005 = vmatprep.subr.bf16.mxu0 0
        %1006 = vmatpush2.bf16.msra.mxu0 0
        %1007 = vmatprep.subr.bf16.mxu0 0
        %1008 = vmatpush2.bf16.msra.mxu0 0
        %1009 = vmatprep.subr.bf16.mxu0 0
        %1010 = vmatpush2.bf16.msra.mxu0 0
        %1011 = vmatprep.subr.bf16.mxu0 0
        %1012 = vmatpush2.bf16.msra.mxu0 0
        %1013 = vmatprep.subr.bf16.mxu0 0
        %1014 = vmatpush2.bf16.msra.mxu0 0
        %1015 = vmatprep.subr.bf16.mxu0 0
        %1016 = vmatpush2.bf16.msra.mxu0 0
        %1017 = vmatprep.subr.bf16.mxu0 0
        %1018 = vmatpush2.bf16.msra.mxu0 0
        %1019 = vmatprep.subr.bf16.mxu0 0
        %1020 = vmatpush2.bf16.msra.mxu0 0
        %1021 = vmatprep.mubr.bf16.mxu0 0
        %1022 = vmatmul.mubr.bf16.gmra.mxu0 %v453
        %v1023 = vpop.f32.mrf.mxu0
        %v1024 = vadd.f32 %v939, %v1023
        %v1025 = vpop.f32.mrf.mxu0
        %v1026 = vpop.f32.mrf.mxu0
        %v1027 = vadd.f32 %v939, %v1026
        %v1028 = vpop.f32.mrf.mxu0
        %1029 = vmatprep.mubr.bf16.mxu0 0
        %1030 = vmatmul.mubr.bf16.gmra.mxu0 %v454
        %v1031 = vpop.f32.mrf.mxu0
        %v1032 = vadd.f32 %v939, %v1031
        %v1033 = vpop.f32.mrf.mxu0
        %v1034 = vpop.f32.mrf.mxu0
        %v1035 = vadd.f32 %v939, %v1034
        %v1036 = vpop.f32.mrf.mxu0
        %1037 = vmatprep.mubr.bf16.mxu0 0
        %1038 = vmatmul.mubr.bf16.gmra.mxu0 %v455
        %v1039 = vpop.f32.mrf.mxu0
        %v1040 = vadd.f32 %v939, %v1039
        %v1041 = vpop.f32.mrf.mxu0
        %v1042 = vpop.f32.mrf.mxu0
        %v1043 = vadd.f32 %v939, %v1042
        %v1044 = vpop.f32.mrf.mxu0
        %1045 = vmatprep.mubr.bf16.mxu0 0
        %1046 = vmatmul.mubr.bf16.gmra.mxu0 %v456
        %v1047 = vpop.f32.mrf.mxu0
        %v1048 = vadd.f32 %v939, %v1047
        %v1049 = vpop.f32.mrf.mxu0
        %v1050 = vpop.f32.mrf.mxu0
        %v1051 = vadd.f32 %v939, %v1050
        %v1052 = vpop.f32.mrf.mxu0
        %1053 = vmatprep.mubr.bf16.mxu0 0
        %1054 = vmatmul.mubr.bf16.gmra.mxu0 %v457
        %v1055 = vpop.f32.mrf.mxu0
        %v1056 = vadd.f32 %v939, %v1055
        %v1057 = vpop.f32.mrf.mxu0
        %v1058 = vpop.f32.mrf.mxu0
        %v1059 = vadd.f32 %v939, %v1058
        %v1060 = vpop.f32.mrf.mxu0
        %1061 = vmatprep.mubr.bf16.mxu0 0
        %1062 = vmatmul.mubr.bf16.gmra.mxu0 %v458
        %v1063 = vpop.f32.mrf.mxu0
        %v1064 = vadd.f32 %v939, %v1063
        %v1065 = vpop.f32.mrf.mxu0
        %v1066 = vpop.f32.mrf.mxu0
        %v1067 = vadd.f32 %v939, %v1066
        %v1068 = vpop.f32.mrf.mxu0
        %1069 = vmatprep.mubr.bf16.mxu0 0
        %1070 = vmatmul.mubr.bf16.gmra.mxu0 %v459
        %v1071 = vpop.f32.mrf.mxu0
        %v1072 = vadd.f32 %v939, %v1071
        %v1073 = vpop.f32.mrf.mxu0
        %v1074 = vpop.f32.mrf.mxu0
        %v1075 = vadd.f32 %v939, %v1074
        %v1076 = vpop.f32.mrf.mxu0
        %1077 = vmatprep.mubr.bf16.mxu0 0
        %1078 = vmatmul.mubr.bf16.gmra.mxu0 %v460
        %v1079 = vpop.f32.mrf.mxu0
        %v1080 = vadd.f32 %v939, %v1079
        %v1081 = vpop.f32.mrf.mxu0
        %v1082 = vpop.f32.mrf.mxu0
        %v1083 = vadd.f32 %v939, %v1082
        %v1084 = vpop.f32.mrf.mxu0
        %1085 = vmatprep.mubr.bf16.mxu0 0
        %1086 = vmatmul.mubr.bf16.gmra.mxu0 %v461
        %v1087 = vpop.f32.mrf.mxu0
        %v1088 = vadd.f32 %v939, %v1087
        %v1089 = vpop.f32.mrf.mxu0
        %v1090 = vpop.f32.mrf.mxu0
        %v1091 = vadd.f32 %v939, %v1090
        %v1092 = vpop.f32.mrf.mxu0
        %1093 = vmatprep.mubr.bf16.mxu0 0
        %1094 = vmatmul.mubr.bf16.gmra.mxu0 %v462
        %v1095 = vpop.f32.mrf.mxu0
        %v1096 = vadd.f32 %v939, %v1095
        %v1097 = vpop.f32.mrf.mxu0
        %v1098 = vpop.f32.mrf.mxu0
        %v1099 = vadd.f32 %v939, %v1098
        %v1100 = vpop.f32.mrf.mxu0
        %1101 = vmatprep.mubr.bf16.mxu0 0
        %1102 = vmatmul.mubr.bf16.gmra.mxu0 %v463
        %v1103 = vpop.f32.mrf.mxu0
        %v1104 = vadd.f32 %v939, %v1103
        %v1105 = vpop.f32.mrf.mxu0
        %v1106 = vpop.f32.mrf.mxu0
        %v1107 = vadd.f32 %v939, %v1106
        %v1108 = vpop.f32.mrf.mxu0
        %1109 = vmatprep.mubr.bf16.mxu0 0
        %1110 = vmatmul.mubr.bf16.gmra.mxu0 %v464
        %v1111 = vpop.f32.mrf.mxu0
        %v1112 = vadd.f32 %v939, %v1111
        %v1113 = vpop.f32.mrf.mxu0
        %v1114 = vpop.f32.mrf.mxu0
        %v1115 = vadd.f32 %v939, %v1114
        %v1116 = vpop.f32.mrf.mxu0
        %1117 = vmatprep.mubr.bf16.mxu0 0
        %1118 = vmatmul.mubr.bf16.gmra.mxu0 %v465
        %v1119 = vpop.f32.mrf.mxu0
        %v1120 = vadd.f32 %v939, %v1119
        %v1121 = vpop.f32.mrf.mxu0
        %v1122 = vpop.f32.mrf.mxu0
        %v1123 = vadd.f32 %v939, %v1122
        %v1124 = vpop.f32.mrf.mxu0
        %1125 = vmatprep.mubr.bf16.mxu0 0
        %1126 = vmatmul.mubr.bf16.gmra.mxu0 %v466
        %v1127 = vpop.f32.mrf.mxu0
        %v1128 = vadd.f32 %v939, %v1127
        %v1129 = vpop.f32.mrf.mxu0
        %v1130 = vpop.f32.mrf.mxu0
        %v1131 = vadd.f32 %v939, %v1130
        %v1132 = vpop.f32.mrf.mxu0
        %1133 = vmatprep.mubr.bf16.mxu0 0
        %1134 = vmatmul.mubr.bf16.gmra.mxu0 %v467
        %v1135 = vpop.f32.mrf.mxu0
        %v1136 = vadd.f32 %v939, %v1135
        %v1137 = vpop.f32.mrf.mxu0
        %v1138 = vpop.f32.mrf.mxu0
        %v1139 = vadd.f32 %v939, %v1138
        %v1140 = vpop.f32.mrf.mxu0
        %1141 = vmatprep.mubr.bf16.mxu0 0
        %1142 = vmatmul.mubr.bf16.gmra.mxu0 %v468
        %v1143 = vpop.f32.mrf.mxu0
        %v1144 = vadd.f32 %v939, %v1143
        %v1145 = vpop.f32.mrf.mxu0
        %v1146 = vpop.f32.mrf.mxu0
        %v1147 = vadd.f32 %v939, %v1146
        %v1148 = vpop.f32.mrf.mxu0
        %1149 = vdwg.mxu0
        %v1150 = vpack.c.bf16 %v1027, %v1024
        %v1151 = vpack.c.bf16 %v1035, %v1032
        %v1152 = vpack.c.bf16 %v1043, %v1040
        %v1153 = vpack.c.bf16 %v1051, %v1048
        %v1154 = vpack.c.bf16 %v1059, %v1056
        %v1155 = vpack.c.bf16 %v1067, %v1064
        %v1156 = vpack.c.bf16 %v1075, %v1072
        %v1157 = vpack.c.bf16 %v1083, %v1080
        %v1158 = vpack.c.bf16 %v1091, %v1088
        %v1159 = vpack.c.bf16 %v1099, %v1096
        %v1160 = vpack.c.bf16 %v1107, %v1104
        %v1161 = vpack.c.bf16 %v1115, %v1112
        %v1162 = vpack.c.bf16 %v1123, %v1120
        %v1163 = vpack.c.bf16 %v1131, %v1128
        %v1164 = vpack.c.bf16 %v1139, %v1136
        %v1165 = vpack.c.bf16 %v1147, %v1144
        %v1182 = vunpack.c.l.b16 %v1150
        %v1183 = vunpack.c.h.b16 %v1150
        %v1184 = vunpack.c.l.b16 %v1151
        %v1185 = vunpack.c.h.b16 %v1151
        %v1186 = vunpack.c.l.b16 %v1152
        %v1187 = vunpack.c.h.b16 %v1152
        %v1188 = vunpack.c.l.b16 %v1153
        %v1189 = vunpack.c.h.b16 %v1153
        %v1190 = vunpack.c.l.b16 %v1154
        %v1191 = vunpack.c.h.b16 %v1154
        %v1192 = vunpack.c.l.b16 %v1155
        %v1193 = vunpack.c.h.b16 %v1155
        %v1194 = vunpack.c.l.b16 %v1156
        %v1195 = vunpack.c.h.b16 %v1156
        %v1196 = vunpack.c.l.b16 %v1157
        %v1197 = vunpack.c.h.b16 %v1157
        %v1198 = vunpack.c.l.b16 %v1158
        %v1199 = vunpack.c.h.b16 %v1158
        %v1200 = vunpack.c.l.b16 %v1159
        %v1201 = vunpack.c.h.b16 %v1159
        %v1202 = vunpack.c.l.b16 %v1160
        %v1203 = vunpack.c.h.b16 %v1160
        %v1204 = vunpack.c.l.b16 %v1161
        %v1205 = vunpack.c.h.b16 %v1161
        %v1206 = vunpack.c.l.b16 %v1162
        %v1207 = vunpack.c.h.b16 %v1162
        %v1208 = vunpack.c.l.b16 %v1163
        %v1209 = vunpack.c.h.b16 %v1163
        %v1210 = vunpack.c.l.b16 %v1164
        %v1211 = vunpack.c.h.b16 %v1164
        %v1212 = vunpack.c.l.b16 %v1165
        %v1213 = vunpack.c.h.b16 %v1165
        %v1214 = vpack.c.b16 %v1182, %v1182
        %v1215 = vpack.c.b16 %v1183, %v1183
        %v1216 = vpack.c.b16 %v1184, %v1184
        %v1217 = vpack.c.b16 %v1185, %v1185
        %v1218 = vpack.c.b16 %v1186, %v1186
        %v1219 = vpack.c.b16 %v1187, %v1187
        %v1220 = vpack.c.b16 %v1188, %v1188
        %v1221 = vpack.c.b16 %v1189, %v1189
        %v1222 = vpack.c.b16 %v1190, %v1190
        %v1223 = vpack.c.b16 %v1191, %v1191
        %v1224 = vpack.c.b16 %v1192, %v1192
        %v1225 = vpack.c.b16 %v1193, %v1193
        %v1226 = vpack.c.b16 %v1194, %v1194
        %v1227 = vpack.c.b16 %v1195, %v1195
        %v1228 = vpack.c.b16 %v1196, %v1196
        %v1229 = vpack.c.b16 %v1197, %v1197
        %v1230 = vpack.c.b16 %v1198, %v1198
        %v1231 = vpack.c.b16 %v1199, %v1199
        %v1232 = vpack.c.b16 %v1200, %v1200
        %v1233 = vpack.c.b16 %v1201, %v1201
        %v1234 = vpack.c.b16 %v1202, %v1202
        %v1235 = vpack.c.b16 %v1203, %v1203
        %v1236 = vpack.c.b16 %v1204, %v1204
        %v1237 = vpack.c.b16 %v1205, %v1205
        %v1238 = vpack.c.b16 %v1206, %v1206
        %v1239 = vpack.c.b16 %v1207, %v1207
        %v1240 = vpack.c.b16 %v1208, %v1208
        %v1241 = vpack.c.b16 %v1209, %v1209
        %v1242 = vpack.c.b16 %v1210, %v1210
        %v1243 = vpack.c.b16 %v1211, %v1211
        %v1244 = vpack.c.b16 %v1212, %v1212
        %v1245 = vpack.c.b16 %v1213, %v1213
        %1278 = vst [vmem:[%s329] sm:$0xf] %v1214
        %1279 = vst [vmem:[%s329 + $0x4] sm:$0xf] %v1215
        %1280 = vst [vmem:[%s329 + $0x8] sm:$0xf] %v1216
        %1281 = vst [vmem:[%s329 + $0xc] sm:$0xf] %v1217
        %1282 = vst [vmem:[%s329 + $0x10] sm:$0xf] %v1218
        %1283 = vst [vmem:[%s329 + $0x14] sm:$0xf] %v1219
        %1284 = vst [vmem:[%s329 + $0x18] sm:$0xf] %v1220
        %1285 = vst [vmem:[%s329 + $0x1c] sm:$0xf] %v1221
        %1286 = vst [vmem:[%s329 + $0x20] sm:$0xf] %v1222
        %1287 = vst [vmem:[%s329 + $0x24] sm:$0xf] %v1223
        %1288 = vst [vmem:[%s329 + $0x28] sm:$0xf] %v1224
        %1289 = vst [vmem:[%s329 + $0x2c] sm:$0xf] %v1225
        %1290 = vst [vmem:[%s329 + $0x30] sm:$0xf] %v1226
        %1291 = vst [vmem:[%s329 + $0x34] sm:$0xf] %v1227
        %1292 = vst [vmem:[%s329 + $0x38] sm:$0xf] %v1228
        %1293 = vst [vmem:[%s329 + $0x3c] sm:$0xf] %v1229
        %1294 = vst [vmem:[%s329 + $0x40] sm:$0xf] %v1230
        %1295 = vst [vmem:[%s329 + $0x44] sm:$0xf] %v1231
        %1296 = vst [vmem:[%s329 + $0x48] sm:$0xf] %v1232
        %1297 = vst [vmem:[%s329 + $0x4c] sm:$0xf] %v1233
        %1298 = vst [vmem:[%s329 + $0x50] sm:$0xf] %v1234
        %1299 = vst [vmem:[%s329 + $0x54] sm:$0xf] %v1235
        %1300 = vst [vmem:[%s329 + $0x58] sm:$0xf] %v1236
        %1301 = vst [vmem:[%s329 + $0x5c] sm:$0xf] %v1237
        %1302 = vst [vmem:[%s329 + $0x60] sm:$0xf] %v1238
        %1303 = vst [vmem:[%s329 + $0x64] sm:$0xf] %v1239
        %1304 = vst [vmem:[%s329 + $0x68] sm:$0xf] %v1240
        %1305 = vst [vmem:[%s329 + $0x6c] sm:$0xf] %v1241
        %1306 = vst [vmem:[%s329 + $0x70] sm:$0xf] %v1242
        %1307 = vst [vmem:[%s329 + $0x74] sm:$0xf] %v1243
        %1308 = vst [vmem:[%s329 + $0x78] sm:$0xf] %v1244
        %1309 = vst [vmem:[%s329 + $0x7c] sm:$0xf] %v1245
        %s1310 = sand.u32 %s162, 1
        %s1311 = scalar_lea.sflag [#allocation4], %s1310
        %s1312 = sand.u32 %s162, 1
        %s1313 = smul.addr %s1312, 128
        %s1314 = scalar_lea.vmem [#allocation8], %s1313
        %s1315 = sand.u32 %s190, 1
        %s1316 = scalar_lea.sflag [#allocation10], %s1315
        %s1317 = sand.u32 %s190, 1
        %s1318 = smul.addr %s1317, 128
        %s1319 = scalar_lea.vmem [#allocation9], %s1318
        // Predicated region
        $region53: #{tpu_custom_call.1} parent=39 // pred_check
          %p1320 = pneg %p172
        $region54: #{tpu_custom_call.1} parent=39 // pred_check_branch
          %1322 = sbr.rel (%p1320) target = $region56
        $region55: #{tpu_custom_call.1} parent=39 // pred_region
          %s1323 = smul.u32 32, %s33
          %s1325 = ssub.s32 2048, 2048
          %1326 = vsyncadd %s1311, %s1325
          %s1327 = smul.addr %s32, 32
          %s1328 = sadd.s32 %s1323, %s1327
          %s1329 = smul.addr %s1328, 64
          %s1330 = scalar_lea.hbm %s5, %s1329
          %s1331 = sshll.u32 %s1314, 4
          %s1332 = int_to_ptr.vmem [resolvable:$true] %s1331
          %1337 = dma.vmem_to_hbm [thread:$0]  %s1332, 2048, %s1330, %s1311, 64, 64, 4
        $region56: #{tpu_custom_call.1} parent=39 // pred_fallthru
          _
        // Predicated region
        $region57: #{tpu_custom_call.1} parent=39 // pred_check
          %p1338 = pneg %p200
        $region58: #{tpu_custom_call.1} parent=39 // pred_check_branch
          %1340 = sbr.rel (%p1338) target = $region60
        $region59: #{tpu_custom_call.1} parent=39 // pred_region
          %s1341 = smul.u32 32, %s33
          %s1343 = ssub.s32 2048, 2048
          %1344 = vsyncadd %s1316, %s1343
          %s1345 = smul.addr %s32, 32
          %s1346 = sadd.s32 %s1341, %s1345
          %s1347 = smul.addr %s1346, 64
          %s1348 = scalar_lea.hbm %s6, %s1347
          %s1349 = sshll.u32 %s1319, 4
          %s1350 = int_to_ptr.vmem [resolvable:$true] %s1349
          %1355 = dma.vmem_to_hbm [thread:$0]  %s1350, 2048, %s1348, %s1316, 64, 64, 4
        $region60: #{tpu_custom_call.1} parent=39 // pred_fallthru
          _
      $region40: #{tpu_custom_call.1} parent=5 // pred_fallthru
        _
      %p1356 = scmp.le.s32.totalorder 2, %s23
      // Predicated region
      $region61: #{tpu_custom_call.1} parent=5 // pred_check
        %p1357 = pneg %p1356
      $region62: #{tpu_custom_call.1} parent=5 // pred_check_branch
        %1359 = sbr.rel (%p1357) target = $region64
      $region63: #{tpu_custom_call.1} parent=5 // pred_region
        %s1360 = ssub.s32 %s23, 2
        // Predicated region
        $region65: #{tpu_custom_call.1} parent=63 // pred_check
          %p1361 = pneg %p178
        $region66: #{tpu_custom_call.1} parent=63 // pred_check_branch
          %1363 = sbr.rel (%p1361) target = $region68
        $region67: #{tpu_custom_call.1} parent=63 // pred_region
          %s1364 = sand.u32 %s163, 1
          %s1365 = scalar_lea.sflag [#allocation4], %s1364
          %s1366 = sand.u32 %s163, 1
          %s1367 = smul.addr %s1366, 128
          %s1368 = scalar_lea.vmem [#allocation8], %s1367
          %1369 = dma.done %s1365, 2048
        $region68: #{tpu_custom_call.1} parent=63 // pred_fallthru
          _
        // Predicated region
        $region69: #{tpu_custom_call.1} parent=63 // pred_check
          %p1370 = pneg %p206
        $region70: #{tpu_custom_call.1} parent=63 // pred_check_branch
          %1372 = sbr.rel (%p1370) target = $region72
        $region71: #{tpu_custom_call.1} parent=63 // pred_region
          %s1373 = sand.u32 %s191, 1
          %s1374 = scalar_lea.sflag [#allocation10], %s1373
          %s1375 = sand.u32 %s191, 1
          %s1376 = smul.addr %s1375, 128
          %s1377 = scalar_lea.vmem [#allocation9], %s1376
          %1378 = dma.done %s1374, 2048
        $region72: #{tpu_custom_call.1} parent=63 // pred_fallthru
          _
      $region64: #{tpu_custom_call.1} parent=5 // pred_fallthru
        _
    $region6: #{tpu_custom_call.1} parent=1 // loop_footer
      %s27 = sadd.s32 1, %s23
    $region7: #{tpu_custom_call.1} parent=1 // loop_footer_branch
      %22 = sbr.rel target = $region3
    $region8: #{tpu_custom_call.1} parent=1 // loop_exit
      _
    %1379 = vsyncpa [#allocation3], 1
    %s1380 = scalar_lea.sflag [#allocation3], 1
    %1381 = vsyncpa %s1380, 1
    %1382 = vsyncpa [#allocation6], 1
    %1383 = vsyncpa [#allocation4], 1
    %s1384 = scalar_lea.sflag [#allocation4], 1
    %1385 = vsyncpa %s1384, 1
    %1386 = vsyncpa [#allocation10], 1
    %s1387 = scalar_lea.sflag [#allocation10], 1
    %1388 = vsyncpa %s1387, 1

</llo_original>
